<compile_context>
chip_gen: v7x
topology: tpu7x:2x2x1
jax: 0.10.0
libtpu: 0.0.40
codegen_flags: <defaults>
</compile_context>

<pallas_src>
import functools

import jax
import jax.numpy as jnp
from jax import lax
from jax.experimental import pallas as pl
from jax.experimental.pallas import tpu as pltpu

HM_BINS = 208   # 201 real bins (bin index shifted by +100), padded to a bf16-sublane multiple


def _round_up(x, m):
    return ((x + m - 1) // m) * m


def _weighted_mse_kernel(pred_ref, lab_ref, hmT_ref, out_ref, *, alpha):
    pred = pred_ref[...]                       # (2, TN) f32: row0 = lat_norm, row1 = lon_norm
    lab = lab_ref[...]                         # (2, TN) f32
    err = jnp.abs(pred - lab)                  # (2, TN)

    # Folded denorm + bin:
    #   floor((p*180-90)/0.9)+100 == floor((p*360-180)/1.8)+100 == floor(200*p)
    idx = jnp.floor(pred * 200.0).astype(jnp.int32)    # (2, TN)
    idx_lat = idx[0:1, :]                              # (1, TN)
    idx_lon = idx[1:2, :]                              # (1, TN)

    tn = pred.shape[1]
    # One iota shared by the lat and lon compares (HM_BINS is the same for both).
    bin_iota = lax.broadcasted_iota(jnp.int32, (HM_BINS, tn), 0)

    # Gather-as-matmul #1: rows[j, n] = heatmap[idx_lat[n], j]
    # (out-of-range lat index -> all-zero one-hot column -> zero row).
    oh_lat = (bin_iota == idx_lat).astype(jnp.bfloat16)            # (HM_BINS, TN), exact in bf16
    rows = jnp.dot(hmT_ref[...], oh_lat,
                   preferred_element_type=jnp.float32)             # (HM_BINS, TN) f32

    # Gather-as-matmul #2: select the lon row, then reduce over the bin axis on the
    # MXU via an all-ones bf16 LHS.  masked[:, n] has at most one nonzero entry and
    # that entry is an exact bf16 heatmap value, so the bf16 cast is exact.
    masked = jnp.where(bin_iota == idx_lon, rows, 0.0).astype(jnp.bfloat16)    # (HM_BINS, TN)
    ones_lhs = jnp.ones((8, HM_BINS), jnp.bfloat16)
    w = jnp.dot(ones_lhs, masked, preferred_element_type=jnp.float32)[0:1, :]  # (1, TN)
    # w[n] = heatmap[idx_lat[n], idx_lon[n]]; missing / out-of-range keys -> 0.0
    # (matches dict.get(key, 0.0)).

    # weighted = err + err*(alpha - alpha*w) == err * (1 + alpha*(1 - w))
    weighted = err * (1.0 + alpha * (1.0 - w))                     # (2, TN)

    # Padded columns have pred == lab == 0 -> err == 0 -> contribute exactly 0.
    # Per-block partial sum, broadcast into a lane/sublane-aligned (1, 8, 128) tile.
    out_ref[...] = jnp.broadcast_to(jnp.sum(weighted), out_ref.shape)


def _prep_heatmap(heatmap_table):
    """(n_lat, n_lon) table -> transposed, padded (HM_BINS, HM_BINS) bf16 MXU operand."""
    n_lat, n_lon = heatmap_table.shape
    assert n_lat <= HM_BINS and n_lon <= HM_BINS
    hm_t = jnp.pad(jnp.asarray(heatmap_table, jnp.float32).T,
                   ((0, HM_BINS - n_lon), (0, HM_BINS - n_lat)))
    return hm_t.astype(jnp.bfloat16)


@functools.partial(jax.jit, static_argnames=("alpha", "block_n"))
def weighted_mse_loss(predictions, labels, heatmap_table, alpha=0.1, block_n=4096):
    n_rows = predictions.shape[0]

    # Lane-dense layout: (N, 2) -> (2, N), N padded to a multiple of the column tile.
    tn = min(_round_up(block_n, 128), max(128, _round_up(n_rows, 128)))
    n_pad = _round_up(max(n_rows, tn), tn)
    grid = n_pad // tn

    # Single transpose + pad (fused by XLA under this jit); no at[].set() scatter pass.
    pred_t = jnp.pad(jnp.asarray(predictions, jnp.float32).T, ((0, 0), (0, n_pad - n_rows)))
    lab_t = jnp.pad(jnp.asarray(labels, jnp.float32).T, ((0, 0), (0, n_pad - n_rows)))
    hm_t = _prep_heatmap(heatmap_table)

    kernel = functools.partial(_weighted_mse_kernel, alpha=float(alpha))

    partials = pl.pallas_call(
        kernel,
        out_shape=jax.ShapeDtypeStruct((grid, 8, 128), jnp.float32),
        grid_spec=pltpu.PrefetchScalarGridSpec(
            num_scalar_prefetch=0,
            grid=(grid,),
            in_specs=[
                pl.BlockSpec((2, tn), lambda i: (0, i)),             # predictions (2, N)
                pl.BlockSpec((2, tn), lambda i: (0, i)),             # labels      (2, N)
                pl.BlockSpec((HM_BINS, HM_BINS), lambda i: (0, 0)),  # heatmap, resident in VMEM
            ],
            out_specs=pl.BlockSpec((1, 8, 128), lambda i: (i, 0, 0)),  # per-block partial sums
        ),
        compiler_params=pltpu.CompilerParams(
            dimension_semantics=("parallel",),      # blocks independent -> both TCs on v7x
            vmem_limit_bytes=32 * 1024 * 1024,      # safe scoped budget on v5e/v6e/v7x
        ),
    )(pred_t, lab_t, hm_t)

    return jnp.sum(partials[:, 0, 0]) * (1.0 / float(n_rows * 2))


if __name__ == "__main__":
    key = jax.random.PRNGKey(0)
    k1, k2, k3, k4, k5 = jax.random.split(key, 5)

    N = 200
    alpha = 0.1

    # Predictions built safely away from bin boundaries so the folded bin
    # computation provably matches the reference formula under f32 rounding.
    bin_idx = jax.random.randint(k1, (N, 2), 0, 200)
    frac = jax.random.uniform(k2, (N, 2), minval=0.05, maxval=0.95)
    predictions = (bin_idx.astype(jnp.float32) + frac) / 200.0     # in (0, 1)
    labels = jax.random.uniform(k3, (N, 2), dtype=jnp.float32)

    # Dense (201, 201) heatmap table indexed by [lat_bin+100, lon_bin+100].
    # Zeroed entries emulate missing JSON keys (dict.get(key, 0.0)).
    # TODO(synk): the JSON file load / string-keyed dict of the nn.Module has no
    # in-kernel equivalent; it is replaced by this dense bin table.
    hm_vals = jax.random.uniform(k4, (201, 201), dtype=jnp.float32)
    hm_mask = (jax.random.uniform(k5, (201, 201)) > 0.3).astype(jnp.float32)
    heatmap_table = hm_vals * hm_mask

    loss = weighted_mse_loss(predictions, labels, heatmap_table, alpha=alpha)
    loss = jax.block_until_ready(loss)

    # Pure-JAX reference following the PyTorch module exactly (f32 heatmap).
    err = jnp.abs(predictions - labels)
    lat = predictions[:, 0] * 180.0 - 90.0
    lon = predictions[:, 1] * 360.0 - 180.0
    xi = jnp.floor(lat / 0.9).astype(jnp.int32) + 100
    yi = jnp.floor(lon / 1.8).astype(jnp.int32) + 100
    w_f32 = heatmap_table[xi, yi]
    ref_f32 = jnp.mean(err + err * (alpha - alpha * w_f32[:, None]))

    # Same reference but with the bf16-rounded heatmap the kernel feeds the MXU.
    hm_bf16 = heatmap_table.astype(jnp.bfloat16).astype(jnp.float32)
    w_bf = hm_bf16[xi, yi]
    ref_bf = jnp.mean(err + err * (alpha - alpha * w_bf[:, None]))

    assert abs(float(loss) - float(ref_bf)) < 1e-5, (float(loss), float(ref_bf))
    assert abs(float(loss) - float(ref_f32)) < 2e-3, (float(loss), float(ref_f32))
    print("KERNEL_OK")
</pallas_src>

<mosaic_0001>
module attributes {stable_mosaic.version = 11 : i64} {
  func.func @_weighted_mse_kernel(%arg0: i32, %arg1: memref<2x256xf32, #tpu.memory_space<vmem>>, %arg2: memref<2x256xf32, #tpu.memory_space<vmem>>, %arg3: memref<208x208xbf16, #tpu.memory_space<vmem>>, %arg4: memref<1x8x128xf32, #tpu.memory_space<vmem>>) attributes {dimension_semantics = [#tpu.dimension_semantics<parallel>], iteration_bounds = array<i64: 1>, scalar_prefetch = 0 : i64, scratch_operands = 0 : i64, tpu.core_type = #tpu.core_type<tc>, window_params = [{transform_indices = @transform_0, window_bounds = array<i64: 2, 256>}, {transform_indices = @transform_1, window_bounds = array<i64: 2, 256>}, {pipeline_mode = #tpu.pipeline_mode<synchronous>, transform_indices = @transform_2, window_bounds = array<i64: 208, 208>}, {transform_indices = @transform_3, window_bounds = array<i64: 1, 8, 128>}]} {
    %c0 = arith.constant 0 : index
    %c0_0 = arith.constant 0 : index
    %0 = vector.load %arg1[%c0, %c0_0] : memref<2x256xf32, #tpu.memory_space<vmem>>, vector<2x256xf32>
    %c0_1 = arith.constant 0 : index
    %c0_2 = arith.constant 0 : index
    %1 = vector.load %arg2[%c0_1, %c0_2] : memref<2x256xf32, #tpu.memory_space<vmem>>, vector<2x256xf32>
    %2 = arith.subf %0, %1 : vector<2x256xf32>
    %3 = math.absf %2 : vector<2x256xf32>
    %cst = arith.constant 2.000000e+02 : f32
    %4 = vector.broadcast %cst : f32 to vector<2x256xf32>
    %5 = arith.mulf %0, %4 : vector<2x256xf32>
    %6 = math.floor %5 : vector<2x256xf32>
    %7 = arith.fptosi %6 : vector<2x256xf32> to vector<2x256xi32>
    %8 = vector.extract_strided_slice %7 {offsets = [0, 0], sizes = [1, 256], strides = [1, 1]} : vector<2x256xi32> to vector<1x256xi32>
    %9 = vector.extract_strided_slice %7 {offsets = [1, 0], sizes = [1, 256], strides = [1, 1]} : vector<2x256xi32> to vector<1x256xi32>
    %10 = tpu.iota {dimensions = array<i32: 0>} : vector<208x256xi32>
    %11 = vector.broadcast %8 : vector<1x256xi32> to vector<208x256xi32>
    %12 = arith.cmpi eq, %10, %11 : vector<208x256xi32>
    %13 = arith.extui %12 : vector<208x256xi1> to vector<208x256xi32>
    %14 = arith.sitofp %13 : vector<208x256xi32> to vector<208x256xf32>
    %15 = arith.truncf %14 : vector<208x256xf32> to vector<208x256xbf16>
    %c0_3 = arith.constant 0 : index
    %c0_4 = arith.constant 0 : index
    %16 = vector.load %arg3[%c0_3, %c0_4] : memref<208x208xbf16, #tpu.memory_space<vmem>>, vector<208x208xbf16>
    %cst_5 = arith.constant dense<0.000000e+00> : vector<208x256xf32>
    %17 = tpu.matmul %16, %15, %cst_5 {dimension_numbers = #tpu.dot_dimension_numbers<[1], [0], [0], [1], [0, 0, 1, 1], [], []>} : vector<208x208xbf16>, vector<208x256xbf16>, vector<208x256xf32> -> vector<208x256xf32>
    %18 = vector.broadcast %9 : vector<1x256xi32> to vector<208x256xi32>
    %19 = arith.cmpi eq, %10, %18 : vector<208x256xi32>
    %cst_6 = arith.constant 0.000000e+00 : f32
    %20 = vector.broadcast %cst_6 : f32 to vector<208x256xf32>
    %21 = arith.select %19, %17, %20 : vector<208x256xi1>, vector<208x256xf32>
    %22 = arith.truncf %21 : vector<208x256xf32> to vector<208x256xbf16>
    %cst_7 = arith.constant 1.000000e+00 : bf16
    %23 = vector.broadcast %cst_7 : bf16 to vector<8x208xbf16>
    %cst_8 = arith.constant dense<0.000000e+00> : vector<8x256xf32>
    %24 = tpu.matmul %23, %22, %cst_8 {dimension_numbers = #tpu.dot_dimension_numbers<[1], [0], [0], [1], [0, 0, 1, 1], [], []>} : vector<8x208xbf16>, vector<208x256xbf16>, vector<8x256xf32> -> vector<8x256xf32>
    %25 = vector.extract_strided_slice %24 {offsets = [0, 0], sizes = [1, 256], strides = [1, 1]} : vector<8x256xf32> to vector<1x256xf32>
    %cst_9 = arith.constant 1.000000e+00 : f32
    %26 = vector.broadcast %cst_9 : f32 to vector<1x256xf32>
    %27 = arith.subf %26, %25 : vector<1x256xf32>
    %cst_10 = arith.constant 1.000000e-01 : f32
    %28 = vector.broadcast %cst_10 : f32 to vector<1x256xf32>
    %29 = arith.mulf %28, %27 : vector<1x256xf32>
    %cst_11 = arith.constant 1.000000e+00 : f32
    %30 = vector.broadcast %cst_11 : f32 to vector<1x256xf32>
    %31 = arith.addf %30, %29 : vector<1x256xf32>
    %32 = vector.broadcast %31 : vector<1x256xf32> to vector<2x256xf32>
    %33 = arith.mulf %3, %32 : vector<2x256xf32>
    %34 = vector.shape_cast %33 : vector<2x256xf32> to vector<1x2x256xf32>
    %cst_12 = arith.constant dense<0.000000e+00> : vector<1xf32>
    %35 = vector.multi_reduction <add>, %34, %cst_12 [1, 2] : vector<1x2x256xf32> to vector<1xf32>
    %36 = vector.shape_cast %35 : vector<1xf32> to vector<1x1x1xf32>
    %37 = vector.extract %36[0, 0, 0] : f32 from vector<1x1x1xf32>
    %38 = vector.broadcast %37 : f32 to vector<1x8x128xf32>
    %c0_13 = arith.constant 0 : index
    %c0_14 = arith.constant 0 : index
    %c0_15 = arith.constant 0 : index
    %39 = vector.load %arg4[%c0_13, %c0_14, %c0_15] : memref<1x8x128xf32, #tpu.memory_space<vmem>>, vector<1x8x128xf32>
    tpu.vector_store %arg4[%c0_13, %c0_14, %c0_15], %38 {strides = array<i32>} : memref<1x8x128xf32, #tpu.memory_space<vmem>>, vector<1x8x128xf32>,
    return
  }
  func.func @transform_0(%arg0: i32) -> (i32, i32) {
    %c0_i32 = arith.constant 0 : i32
    %c0_i32_0 = arith.constant 0 : i32
    return %c0_i32, %arg0 : i32, i32
  }
  func.func @transform_1(%arg0: i32) -> (i32, i32) {
    %c0_i32 = arith.constant 0 : i32
    %c0_i32_0 = arith.constant 0 : i32
    return %c0_i32, %arg0 : i32, i32
  }
  func.func @transform_2(%arg0: i32) -> (i32, i32) {
    %c0_i32 = arith.constant 0 : i32
    %c0_i32_0 = arith.constant 0 : i32
    %c0_i32_1 = arith.constant 0 : i32
    return %c0_i32, %c0_i32_0 : i32, i32
  }
  func.func @transform_3(%arg0: i32) -> (i32, i32, i32) {
    %c0_i32 = arith.constant 0 : i32
    %c0_i32_0 = arith.constant 0 : i32
    %c0_i32_1 = arith.constant 0 : i32
    return %arg0, %c0_i32, %c0_i32_0 : i32, i32, i32
  }
}

</mosaic_0001>

<llo_original>
// kernel: weighted_mse_loss.1
$region0: #{weighted_mse_loss.1}
  #allocation0 [shape = 'u32[]', space=smem, size = 0x4, offset = 0x4, fixed_abs, tag = 'smem constant byte address 0x4 - core index']
  #allocation1 [shape = 'u32[144,128]{1,0:T(1,128)}', space=vmem, size = 0x12000, scoped, tag = 'internal scratch']
  %s0 = inlined_call_operand.vmem [shape: f32[2,256], index: 0, kind: input, shape index: {}]
  %s1 = inlined_call_operand.vmem [shape: f32[2,256], index: 1, kind: input, shape index: {}]
  %s2 = inlined_call_operand.vmem [shape: bf16[208,208], index: 2, kind: input, shape index: {}]
  %s3 = inlined_call_operand.vmem [shape: f32[1,8,128], index: 3, kind: output, shape index: {}]
  %s4 = sld [smem:[#allocation0]]
  $region22: #{weighted_mse_loss.1} parent=0
    _
  %s6 = ssub.s32 1, %s4
  %s7 = scalar_select 0, %s6, %s4
  // Predicated region
  $region2: #{weighted_mse_loss.1} parent=0 // pred_check
    _
  $region3: #{weighted_mse_loss.1} parent=0 // pred_check_branch
    %9 = sbr.rel (0) target = $region5
  $region4: #{weighted_mse_loss.1} parent=0 // pred_region
    _
  $region5: #{weighted_mse_loss.1} parent=0 // pred_fallthru
    _
  // Predicated region
  $region6: #{weighted_mse_loss.1} parent=0 // pred_check
    _
  $region7: #{weighted_mse_loss.1} parent=0 // pred_check_branch
    %11 = sbr.rel (0) target = $region9
  $region8: #{weighted_mse_loss.1} parent=0 // pred_region
    _
  $region9: #{weighted_mse_loss.1} parent=0 // pred_fallthru
    _
  // Predicated region
  $region10: #{weighted_mse_loss.1} parent=0 // pred_check
    _
  $region11: #{weighted_mse_loss.1} parent=0 // pred_check_branch
    %13 = sbr.rel (0) target = $region13
  $region12: #{weighted_mse_loss.1} parent=0 // pred_region
    _
  $region13: #{weighted_mse_loss.1} parent=0 // pred_fallthru
    _
  %v16 = vld [vmem:[%s0] sm:$0xf]
  %v17 = vld [vmem:[%s1] sm:$0xf]
  %v18 = vsub.f32 %v16, %v17
  %v19 = vand.u32 2147483647, %v18
  %v20 = vmul.f32 %v16, 200.0
  %v21 = vfloor.f32 %v20
  %v22 = vcvt.f32.s32.to.zero.pseudo %v21
  %v23 = vlaneseq
  %v24 = vshrl.u32 %v23, 7
  %v25 = vadd.s32 %v24, 8
  %v26 = vadd.s32 %v24, 16
  %v27 = vadd.s32 %v24, 24
  %v28 = vadd.s32 %v24, 32
  %v29 = vadd.s32 %v24, 40
  %v30 = vadd.s32 %v24, 48
  %v31 = vadd.s32 %v24, 56
  %v32 = vadd.s32 %v24, 64
  %v33 = vadd.s32 %v24, 72
  %v34 = vadd.s32 %v24, 80
  %v35 = vadd.s32 %v24, 88
  %v36 = vadd.s32 %v24, 96
  %v37 = vadd.s32 %v24, 104
  %v38 = vadd.s32 %v24, 112
  %v39 = vadd.s32 %v24, 120
  %v40 = vadd.s32 %v24, 128
  %v41 = vadd.s32 %v24, 136
  %v42 = vadd.s32 %v24, 144
  %v43 = vadd.s32 %v24, 152
  %v44 = vadd.s32 %v24, 160
  %v45 = vadd.s32 %v24, 168
  %v46 = vadd.s32 %v24, 176
  %v47 = vadd.s32 %v24, 184
  %v48 = vadd.s32 %v24, 192
  %v49 = vadd.s32 %v24, 200
  %v50 = vlaneseq
  %v51 = vshrl.u32 %v50, 7
  %v52 = vsub.s32 0, %v51
  %v53 = vrot.slane %v22, %v52
  %v54 = vlaneseq
  %v55 = vshrl.u32 %v54, 7
  %v56 = vsub.s32 2, %v55
  %v57 = vrot.slane %v22, %v56
  %v58 = vlaneseq
  %v59 = vshrl.u32 %v58, 7
  %v60 = vsub.s32 0, %v59
  %v61 = vrot.slane %v53, %v60
  %v62 = vlaneseq
  %v63 = vshrl.u32 %v62, 7
  %v64 = vsub.s32 0, %v63
  %v65 = vrot.slane %v57, %v64
  %vm66 = vcmp.eq.s32.totalorder %v24, %v61
  %vm67 = vcmp.eq.s32.totalorder %v24, %v65
  %vm68 = vcmp.eq.s32.totalorder %v25, %v61
  %vm69 = vcmp.eq.s32.totalorder %v25, %v65
  %vm70 = vcmp.eq.s32.totalorder %v26, %v61
  %vm71 = vcmp.eq.s32.totalorder %v26, %v65
  %vm72 = vcmp.eq.s32.totalorder %v27, %v61
  %vm73 = vcmp.eq.s32.totalorder %v27, %v65
  %vm74 = vcmp.eq.s32.totalorder %v28, %v61
  %vm75 = vcmp.eq.s32.totalorder %v28, %v65
  %vm76 = vcmp.eq.s32.totalorder %v29, %v61
  %vm77 = vcmp.eq.s32.totalorder %v29, %v65
  %vm78 = vcmp.eq.s32.totalorder %v30, %v61
  %vm79 = vcmp.eq.s32.totalorder %v30, %v65
  %vm80 = vcmp.eq.s32.totalorder %v31, %v61
  %vm81 = vcmp.eq.s32.totalorder %v31, %v65
  %vm82 = vcmp.eq.s32.totalorder %v32, %v61
  %vm83 = vcmp.eq.s32.totalorder %v32, %v65
  %vm84 = vcmp.eq.s32.totalorder %v33, %v61
  %vm85 = vcmp.eq.s32.totalorder %v33, %v65
  %vm86 = vcmp.eq.s32.totalorder %v34, %v61
  %vm87 = vcmp.eq.s32.totalorder %v34, %v65
  %vm88 = vcmp.eq.s32.totalorder %v35, %v61
  %vm89 = vcmp.eq.s32.totalorder %v35, %v65
  %vm90 = vcmp.eq.s32.totalorder %v36, %v61
  %vm91 = vcmp.eq.s32.totalorder %v36, %v65
  %vm92 = vcmp.eq.s32.totalorder %v37, %v61
  %vm93 = vcmp.eq.s32.totalorder %v37, %v65
  %vm94 = vcmp.eq.s32.totalorder %v38, %v61
  %vm95 = vcmp.eq.s32.totalorder %v38, %v65
  %vm96 = vcmp.eq.s32.totalorder %v39, %v61
  %vm97 = vcmp.eq.s32.totalorder %v39, %v65
  %vm98 = vcmp.eq.s32.totalorder %v40, %v61
  %vm99 = vcmp.eq.s32.totalorder %v40, %v65
  %vm100 = vcmp.eq.s32.totalorder %v41, %v61
  %vm101 = vcmp.eq.s32.totalorder %v41, %v65
  %vm102 = vcmp.eq.s32.totalorder %v42, %v61
  %vm103 = vcmp.eq.s32.totalorder %v42, %v65
  %vm104 = vcmp.eq.s32.totalorder %v43, %v61
  %vm105 = vcmp.eq.s32.totalorder %v43, %v65
  %vm106 = vcmp.eq.s32.totalorder %v44, %v61
  %vm107 = vcmp.eq.s32.totalorder %v44, %v65
  %vm108 = vcmp.eq.s32.totalorder %v45, %v61
  %vm109 = vcmp.eq.s32.totalorder %v45, %v65
  %vm110 = vcmp.eq.s32.totalorder %v46, %v61
  %vm111 = vcmp.eq.s32.totalorder %v46, %v65
  %vm112 = vcmp.eq.s32.totalorder %v47, %v61
  %vm113 = vcmp.eq.s32.totalorder %v47, %v65
  %vm114 = vcmp.eq.s32.totalorder %v48, %v61
  %vm115 = vcmp.eq.s32.totalorder %v48, %v65
  %vm116 = vcmp.eq.s32.totalorder %v49, %v61
  %vm117 = vcmp.eq.s32.totalorder %v49, %v65
  %v118 = vsel %vm66, 1, 0
  %v119 = vsel %vm67, 1, 0
  %v120 = vsel %vm68, 1, 0
  %v121 = vsel %vm69, 1, 0
  %v122 = vsel %vm70, 1, 0
  %v123 = vsel %vm71, 1, 0
  %v124 = vsel %vm72, 1, 0
  %v125 = vsel %vm73, 1, 0
  %v126 = vsel %vm74, 1, 0
  %v127 = vsel %vm75, 1, 0
  %v128 = vsel %vm76, 1, 0
  %v129 = vsel %vm77, 1, 0
  %v130 = vsel %vm78, 1, 0
  %v131 = vsel %vm79, 1, 0
  %v132 = vsel %vm80, 1, 0
  %v133 = vsel %vm81, 1, 0
  %v134 = vsel %vm82, 1, 0
  %v135 = vsel %vm83, 1, 0
  %v136 = vsel %vm84, 1, 0
  %v137 = vsel %vm85, 1, 0
  %v138 = vsel %vm86, 1, 0
  %v139 = vsel %vm87, 1, 0
  %v140 = vsel %vm88, 1, 0
  %v141 = vsel %vm89, 1, 0
  %v142 = vsel %vm90, 1, 0
  %v143 = vsel %vm91, 1, 0
  %v144 = vsel %vm92, 1, 0
  %v145 = vsel %vm93, 1, 0
  %v146 = vsel %vm94, 1, 0
  %v147 = vsel %vm95, 1, 0
  %v148 = vsel %vm96, 1, 0
  %v149 = vsel %vm97, 1, 0
  %v150 = vsel %vm98, 1, 0
  %v151 = vsel %vm99, 1, 0
  %v152 = vsel %vm100, 1, 0
  %v153 = vsel %vm101, 1, 0
  %v154 = vsel %vm102, 1, 0
  %v155 = vsel %vm103, 1, 0
  %v156 = vsel %vm104, 1, 0
  %v157 = vsel %vm105, 1, 0
  %v158 = vsel %vm106, 1, 0
  %v159 = vsel %vm107, 1, 0
  %v160 = vsel %vm108, 1, 0
  %v161 = vsel %vm109, 1, 0
  %v162 = vsel %vm110, 1, 0
  %v163 = vsel %vm111, 1, 0
  %v164 = vsel %vm112, 1, 0
  %v165 = vsel %vm113, 1, 0
  %v166 = vsel %vm114, 1, 0
  %v167 = vsel %vm115, 1, 0
  %v168 = vsel %vm116, 1, 0
  %v169 = vsel %vm117, 1, 0
  %v170 = vcvt.s32.f32 %v118
  %v171 = vcvt.s32.f32 %v119
  %v172 = vcvt.s32.f32 %v120
  %v173 = vcvt.s32.f32 %v121
  %v174 = vcvt.s32.f32 %v122
  %v175 = vcvt.s32.f32 %v123
  %v176 = vcvt.s32.f32 %v124
  %v177 = vcvt.s32.f32 %v125
  %v178 = vcvt.s32.f32 %v126
  %v179 = vcvt.s32.f32 %v127
  %v180 = vcvt.s32.f32 %v128
  %v181 = vcvt.s32.f32 %v129
  %v182 = vcvt.s32.f32 %v130
  %v183 = vcvt.s32.f32 %v131
  %v184 = vcvt.s32.f32 %v132
  %v185 = vcvt.s32.f32 %v133
  %v186 = vcvt.s32.f32 %v134
  %v187 = vcvt.s32.f32 %v135
  %v188 = vcvt.s32.f32 %v136
  %v189 = vcvt.s32.f32 %v137
  %v190 = vcvt.s32.f32 %v138
  %v191 = vcvt.s32.f32 %v139
  %v192 = vcvt.s32.f32 %v140
  %v193 = vcvt.s32.f32 %v141
  %v194 = vcvt.s32.f32 %v142
  %v195 = vcvt.s32.f32 %v143
  %v196 = vcvt.s32.f32 %v144
  %v197 = vcvt.s32.f32 %v145
  %v198 = vcvt.s32.f32 %v146
  %v199 = vcvt.s32.f32 %v147
  %v200 = vcvt.s32.f32 %v148
  %v201 = vcvt.s32.f32 %v149
  %v202 = vcvt.s32.f32 %v150
  %v203 = vcvt.s32.f32 %v151
  %v204 = vcvt.s32.f32 %v152
  %v205 = vcvt.s32.f32 %v153
  %v206 = vcvt.s32.f32 %v154
  %v207 = vcvt.s32.f32 %v155
  %v208 = vcvt.s32.f32 %v156
  %v209 = vcvt.s32.f32 %v157
  %v210 = vcvt.s32.f32 %v158
  %v211 = vcvt.s32.f32 %v159
  %v212 = vcvt.s32.f32 %v160
  %v213 = vcvt.s32.f32 %v161
  %v214 = vcvt.s32.f32 %v162
  %v215 = vcvt.s32.f32 %v163
  %v216 = vcvt.s32.f32 %v164
  %v217 = vcvt.s32.f32 %v165
  %v218 = vcvt.s32.f32 %v166
  %v219 = vcvt.s32.f32 %v167
  %v220 = vcvt.s32.f32 %v168
  %v221 = vcvt.s32.f32 %v169
  %v222 = vpack.c.bf16 %v172, %v170
  %v223 = vpack.c.bf16 %v173, %v171
  %v224 = vpack.c.bf16 %v176, %v174
  %v225 = vpack.c.bf16 %v177, %v175
  %v226 = vpack.c.bf16 %v180, %v178
  %v227 = vpack.c.bf16 %v181, %v179
  %v228 = vpack.c.bf16 %v184, %v182
  %v229 = vpack.c.bf16 %v185, %v183
  %v230 = vpack.c.bf16 %v188, %v186
  %v231 = vpack.c.bf16 %v189, %v187
  %v232 = vpack.c.bf16 %v192, %v190
  %v233 = vpack.c.bf16 %v193, %v191
  %v234 = vpack.c.bf16 %v196, %v194
  %v235 = vpack.c.bf16 %v197, %v195
  %v236 = vpack.c.bf16 %v200, %v198
  %v237 = vpack.c.bf16 %v201, %v199
  %v238 = vpack.c.bf16 %v204, %v202
  %v239 = vpack.c.bf16 %v205, %v203
  %v240 = vpack.c.bf16 %v208, %v206
  %v241 = vpack.c.bf16 %v209, %v207
  %v242 = vpack.c.bf16 %v212, %v210
  %v243 = vpack.c.bf16 %v213, %v211
  %v244 = vpack.c.bf16 %v216, %v214
  %v245 = vpack.c.bf16 %v217, %v215
  %v246 = vpack.c.bf16 %v220, %v218
  %v247 = vpack.c.bf16 %v221, %v219
  %v248 = vld [vmem:[%s2] sm:$0xff]
  %v249 = vld [vmem:[%s2 + $0x8] sm:$0xff]
  %v250 = vld [vmem:[%s2 + $0x10] sm:$0xff]
  %v251 = vld [vmem:[%s2 + $0x18] sm:$0xff]
  %v252 = vld [vmem:[%s2 + $0x20] sm:$0xff]
  %v253 = vld [vmem:[%s2 + $0x28] sm:$0xff]
  %v254 = vld [vmem:[%s2 + $0x30] sm:$0xff]
  %v255 = vld [vmem:[%s2 + $0x38] sm:$0xff]
  %v256 = vld [vmem:[%s2 + $0x40] sm:$0xff]
  %v257 = vld [vmem:[%s2 + $0x48] sm:$0xff]
  %v258 = vld [vmem:[%s2 + $0x50] sm:$0xff]
  %v259 = vld [vmem:[%s2 + $0x58] sm:$0xff]
  %v260 = vld [vmem:[%s2 + $0x60] sm:$0xff]
  %v261 = vld [vmem:[%s2 + $0x68] sm:$0xff]
  %v262 = vld [vmem:[%s2 + $0x70] sm:$0xff]
  %v263 = vld [vmem:[%s2 + $0x78] sm:$0xff]
  %v264 = vld [vmem:[%s2 + $0x80] sm:$0xff]
  %v265 = vld [vmem:[%s2 + $0x88] sm:$0xff]
  %v266 = vld [vmem:[%s2 + $0x90] sm:$0xff]
  %v267 = vld [vmem:[%s2 + $0x98] sm:$0xff]
  %v268 = vld [vmem:[%s2 + $0xa0] sm:$0xff]
  %v269 = vld [vmem:[%s2 + $0xa8] sm:$0xff]
  %v270 = vld [vmem:[%s2 + $0xb0] sm:$0xff]
  %v271 = vld [vmem:[%s2 + $0xb8] sm:$0xff]
  %v272 = vld [vmem:[%s2 + $0xc0] sm:$0xff]
  %v273 = vld [vmem:[%s2 + $0xc8] sm:$0xff]
  %v300 = vunpack.c.l.b16 %v248
  %v301 = vunpack.c.h.b16 %v248
  %v302 = vunpack.c.l.b16 %v249
  %v303 = vunpack.c.h.b16 %v249
  %v304 = vunpack.c.l.b16 %v250
  %v305 = vunpack.c.h.b16 %v250
  %v306 = vunpack.c.l.b16 %v251
  %v307 = vunpack.c.h.b16 %v251
  %v308 = vunpack.c.l.b16 %v252
  %v309 = vunpack.c.h.b16 %v252
  %v310 = vunpack.c.l.b16 %v253
  %v311 = vunpack.c.h.b16 %v253
  %v312 = vunpack.c.l.b16 %v254
  %v313 = vunpack.c.h.b16 %v254
  %v314 = vunpack.c.l.b16 %v255
  %v315 = vunpack.c.h.b16 %v255
  %v316 = vunpack.c.l.b16 %v256
  %v317 = vunpack.c.h.b16 %v256
  %v318 = vunpack.c.l.b16 %v257
  %v319 = vunpack.c.h.b16 %v257
  %v320 = vunpack.c.l.b16 %v258
  %v321 = vunpack.c.h.b16 %v258
  %v322 = vunpack.c.l.b16 %v259
  %v323 = vunpack.c.h.b16 %v259
  %v324 = vunpack.c.l.b16 %v260
  %v325 = vunpack.c.h.b16 %v260
  %v326 = vunpack.c.l.b16 %v261
  %v327 = vunpack.c.h.b16 %v261
  %v328 = vunpack.c.l.b16 %v262
  %v329 = vunpack.c.h.b16 %v262
  %v330 = vunpack.c.l.b16 %v263
  %v331 = vunpack.c.h.b16 %v263
  %v332 = vunpack.c.l.b16 %v264
  %v333 = vunpack.c.h.b16 %v264
  %v334 = vunpack.c.l.b16 %v265
  %v335 = vunpack.c.h.b16 %v265
  %v336 = vunpack.c.l.b16 %v266
  %v337 = vunpack.c.h.b16 %v266
  %v338 = vunpack.c.l.b16 %v267
  %v339 = vunpack.c.h.b16 %v267
  %v340 = vunpack.c.l.b16 %v268
  %v341 = vunpack.c.h.b16 %v268
  %v342 = vunpack.c.l.b16 %v269
  %v343 = vunpack.c.h.b16 %v269
  %v344 = vunpack.c.l.b16 %v270
  %v345 = vunpack.c.h.b16 %v270
  %v346 = vunpack.c.l.b16 %v271
  %v347 = vunpack.c.h.b16 %v271
  %v348 = vunpack.c.l.b16 %v272
  %v349 = vunpack.c.h.b16 %v272
  %v350 = vunpack.c.l.b16 %v273
  %v351 = vunpack.c.h.b16 %v273
  %v352 = vpack.c.b16 %v302, %v300
  %v353 = vpack.c.b16 %v303, %v301
  %v354 = vpack.c.b16 %v306, %v304
  %v355 = vpack.c.b16 %v307, %v305
  %v356 = vpack.c.b16 %v310, %v308
  %v357 = vpack.c.b16 %v311, %v309
  %v358 = vpack.c.b16 %v314, %v312
  %v359 = vpack.c.b16 %v315, %v313
  %v360 = vpack.c.b16 %v318, %v316
  %v361 = vpack.c.b16 %v319, %v317
  %v362 = vpack.c.b16 %v322, %v320
  %v363 = vpack.c.b16 %v323, %v321
  %v364 = vpack.c.b16 %v326, %v324
  %v365 = vpack.c.b16 %v327, %v325
  %v366 = vpack.c.b16 %v330, %v328
  %v367 = vpack.c.b16 %v331, %v329
  %v368 = vpack.c.b16 %v334, %v332
  %v369 = vpack.c.b16 %v335, %v333
  %v370 = vpack.c.b16 %v338, %v336
  %v371 = vpack.c.b16 %v339, %v337
  %v372 = vpack.c.b16 %v342, %v340
  %v373 = vpack.c.b16 %v343, %v341
  %v374 = vpack.c.b16 %v346, %v344
  %v375 = vpack.c.b16 %v347, %v345
  %v376 = vpack.c.b16 %v350, %v348
  %v377 = vpack.c.b16 %v351, %v349
  %vm391 = vcmask 654336
  %v393 = vsel %vm391, %v353, 0
  %v396 = vsel %vm391, %v355, 0
  %v399 = vsel %vm391, %v357, 0
  %v402 = vsel %vm391, %v359, 0
  %v405 = vsel %vm391, %v361, 0
  %v408 = vsel %vm391, %v363, 0
  %v411 = vsel %vm391, %v365, 0
  %v414 = vsel %vm391, %v367, 0
  %v417 = vsel %vm391, %v369, 0
  %v420 = vsel %vm391, %v371, 0
  %v423 = vsel %vm391, %v373, 0
  %v426 = vsel %vm391, %v375, 0
  %v429 = vsel %vm391, %v377, 0
  %431 = vmatprep.subr.bf16.mxu0 %v223
  %432 = vmatpush1.bf16.msra.mxu0 %v222
  %433 = vmatprep.subr.bf16.mxu0 %v225
  %434 = vmatpush1.bf16.msra.mxu0 %v224
  %435 = vmatprep.subr.bf16.mxu0 %v227
  %436 = vmatpush1.bf16.msra.mxu0 %v226
  %437 = vmatprep.subr.bf16.mxu0 %v229
  %438 = vmatpush1.bf16.msra.mxu0 %v228
  %439 = vmatprep.subr.bf16.mxu0 %v231
  %440 = vmatpush1.bf16.msra.mxu0 %v230
  %441 = vmatprep.subr.bf16.mxu0 %v233
  %442 = vmatpush1.bf16.msra.mxu0 %v232
  %443 = vmatprep.subr.bf16.mxu0 %v235
  %444 = vmatpush1.bf16.msra.mxu0 %v234
  %445 = vmatprep.subr.bf16.mxu0 %v237
  %446 = vmatpush1.bf16.msra.mxu0 %v236
  %447 = vmatprep.subr.bf16.mxu0 %v239
  %448 = vmatpush1.bf16.msra.mxu0 %v238
  %449 = vmatprep.subr.bf16.mxu0 %v241
  %450 = vmatpush1.bf16.msra.mxu0 %v240
  %451 = vmatprep.subr.bf16.mxu0 %v243
  %452 = vmatpush1.bf16.msra.mxu0 %v242
  %453 = vmatprep.subr.bf16.mxu0 %v245
  %454 = vmatpush1.bf16.msra.mxu0 %v244
  %455 = vmatprep.subr.bf16.mxu0 %v247
  %456 = vmatpush1.bf16.msra.mxu0 %v246
  %457 = vmatprep.subr.bf16.mxu0 0
  %458 = vmatpush1.bf16.msra.mxu0 0
  %459 = vmatprep.subr.bf16.mxu0 0
  %460 = vmatpush1.bf16.msra.mxu0 0
  %461 = vmatprep.subr.bf16.mxu0 0
  %462 = vmatpush1.bf16.msra.mxu0 0
  %463 = vmatprep.mubr.bf16.mxu0 %v393
  %464 = vmatmul.mubr.bf16.gmra.mrb[0].mxu0 %v352
  %v465 = vpop.f32.mrb[0].mxu0
  %v466 = vadd.f32 0.0, %v465
  %v467 = vpop.f32.mrb[0].mxu0
  %v468 = vadd.f32 0.0, %v467
  %v469 = vpop.f32.mrb[0].mxu0
  %v470 = vadd.f32 0.0, %v469
  %v471 = vpop.f32.mrb[0].mxu0
  %v472 = vadd.f32 0.0, %v471
  %473 = vmatprep.mubr.bf16.mxu0 %v396
  %474 = vmatmul.mubr.bf16.gmra.mrb[0].mxu0 %v354
  %v475 = vpop.f32.mrb[0].mxu0
  %v476 = vadd.f32 0.0, %v475
  %v477 = vpop.f32.mrb[0].mxu0
  %v478 = vadd.f32 0.0, %v477
  %v479 = vpop.f32.mrb[0].mxu0
  %v480 = vadd.f32 0.0, %v479
  %v481 = vpop.f32.mrb[0].mxu0
  %v482 = vadd.f32 0.0, %v481
  %483 = vmatprep.mubr.bf16.mxu0 %v399
  %484 = vmatmul.mubr.bf16.gmra.mrb[0].mxu0 %v356
  %v485 = vpop.f32.mrb[0].mxu0
  %v486 = vadd.f32 0.0, %v485
  %v487 = vpop.f32.mrb[0].mxu0
  %v488 = vadd.f32 0.0, %v487
  %v489 = vpop.f32.mrb[0].mxu0
  %v490 = vadd.f32 0.0, %v489
  %v491 = vpop.f32.mrb[0].mxu0
  %v492 = vadd.f32 0.0, %v491
  %493 = vmatprep.mubr.bf16.mxu0 %v402
  %494 = vmatmul.mubr.bf16.gmra.mrb[0].mxu0 %v358
  %v495 = vpop.f32.mrb[0].mxu0
  %v496 = vadd.f32 0.0, %v495
  %v497 = vpop.f32.mrb[0].mxu0
  %v498 = vadd.f32 0.0, %v497
  %v499 = vpop.f32.mrb[0].mxu0
  %v500 = vadd.f32 0.0, %v499
  %v501 = vpop.f32.mrb[0].mxu0
  %v502 = vadd.f32 0.0, %v501
  %503 = vmatprep.mubr.bf16.mxu0 %v405
  %504 = vmatmul.mubr.bf16.gmra.mrb[0].mxu0 %v360
  %v505 = vpop.f32.mrb[0].mxu0
  %v506 = vadd.f32 0.0, %v505
  %v507 = vpop.f32.mrb[0].mxu0
  %v508 = vadd.f32 0.0, %v507
  %v509 = vpop.f32.mrb[0].mxu0
  %v510 = vadd.f32 0.0, %v509
  %v511 = vpop.f32.mrb[0].mxu0
  %v512 = vadd.f32 0.0, %v511
  %513 = vmatprep.mubr.bf16.mxu0 %v408
  %514 = vmatmul.mubr.bf16.gmra.mrb[0].mxu0 %v362
  %v515 = vpop.f32.mrb[0].mxu0
  %v516 = vadd.f32 0.0, %v515
  %v517 = vpop.f32.mrb[0].mxu0
  %v518 = vadd.f32 0.0, %v517
  %v519 = vpop.f32.mrb[0].mxu0
  %v520 = vadd.f32 0.0, %v519
  %v521 = vpop.f32.mrb[0].mxu0
  %v522 = vadd.f32 0.0, %v521
  %523 = vmatprep.mubr.bf16.mxu0 %v411
  %524 = vmatmul.mubr.bf16.gmra.mrb[0].mxu0 %v364
  %v525 = vpop.f32.mrb[0].mxu0
  %v526 = vadd.f32 0.0, %v525
  %v527 = vpop.f32.mrb[0].mxu0
  %v528 = vadd.f32 0.0, %v527
  %v529 = vpop.f32.mrb[0].mxu0
  %v530 = vadd.f32 0.0, %v529
  %v531 = vpop.f32.mrb[0].mxu0
  %v532 = vadd.f32 0.0, %v531
  %533 = vmatprep.mubr.bf16.mxu0 %v414
  %534 = vmatmul.mubr.bf16.gmra.mrb[0].mxu0 %v366
  %v535 = vpop.f32.mrb[0].mxu0
  %v536 = vadd.f32 0.0, %v535
  %v537 = vpop.f32.mrb[0].mxu0
  %v538 = vadd.f32 0.0, %v537
  %v539 = vpop.f32.mrb[0].mxu0
  %v540 = vadd.f32 0.0, %v539
  %v541 = vpop.f32.mrb[0].mxu0
  %v542 = vadd.f32 0.0, %v541
  %543 = vmatprep.mubr.bf16.mxu0 %v417
  %544 = vmatmul.mubr.bf16.gmra.mrb[0].mxu0 %v368
  %v545 = vpop.f32.mrb[0].mxu0
  %v546 = vadd.f32 0.0, %v545
  %v547 = vpop.f32.mrb[0].mxu0
  %v548 = vadd.f32 0.0, %v547
  %v549 = vpop.f32.mrb[0].mxu0
  %v550 = vadd.f32 0.0, %v549
  %v551 = vpop.f32.mrb[0].mxu0
  %v552 = vadd.f32 0.0, %v551
  %553 = vmatprep.mubr.bf16.mxu0 %v420
  %554 = vmatmul.mubr.bf16.gmra.mrb[0].mxu0 %v370
  %v555 = vpop.f32.mrb[0].mxu0
  %v556 = vadd.f32 0.0, %v555
  %v557 = vpop.f32.mrb[0].mxu0
  %v558 = vadd.f32 0.0, %v557
  %v559 = vpop.f32.mrb[0].mxu0
  %v560 = vadd.f32 0.0, %v559
  %v561 = vpop.f32.mrb[0].mxu0
  %v562 = vadd.f32 0.0, %v561
  %563 = vmatprep.mubr.bf16.mxu0 %v423
  %564 = vmatmul.mubr.bf16.gmra.mrb[0].mxu0 %v372
  %v565 = vpop.f32.mrb[0].mxu0
  %v566 = vadd.f32 0.0, %v565
  %v567 = vpop.f32.mrb[0].mxu0
  %v568 = vadd.f32 0.0, %v567
  %v569 = vpop.f32.mrb[0].mxu0
  %v570 = vadd.f32 0.0, %v569
  %v571 = vpop.f32.mrb[0].mxu0
  %v572 = vadd.f32 0.0, %v571
  %573 = vmatprep.mubr.bf16.mxu0 %v426
  %574 = vmatmul.mubr.bf16.gmra.mrb[0].mxu0 %v374
  %v575 = vpop.f32.mrb[0].mxu0
  %v576 = vadd.f32 0.0, %v575
  %v577 = vpop.f32.mrb[0].mxu0
  %v578 = vadd.f32 0.0, %v577
  %v579 = vpop.f32.mrb[0].mxu0
  %v580 = vadd.f32 0.0, %v579
  %v581 = vpop.f32.mrb[0].mxu0
  %v582 = vadd.f32 0.0, %v581
  %583 = vmatprep.mubr.bf16.mxu0 %v429
  %584 = vmatmul.mubr.bf16.gmra.mrb[0].mxu0 %v376
  %v585 = vpop.f32.mrb[0].mxu0
  %v586 = vadd.f32 0.0, %v585
  %v587 = vpop.f32.mrb[0].mxu0
  %v588 = vadd.f32 0.0, %v587
  %v589 = vpop.f32.mrb[0].mxu0
  %v590 = vadd.f32 0.0, %v589
  %v591 = vpop.f32.mrb[0].mxu0
  %v592 = vadd.f32 0.0, %v591
  %593 = vdwg.mxu0
  %v594 = vlaneseq
  %v595 = vshrl.u32 %v594, 7
  %v596 = vsub.s32 1, %v595
  %v597 = vrot.slane %v22, %v596
  %v598 = vlaneseq
  %v599 = vshrl.u32 %v598, 7
  %v600 = vsub.s32 3, %v599
  %v601 = vrot.slane %v22, %v600
  %v602 = vlaneseq
  %v603 = vshrl.u32 %v602, 7
  %v604 = vsub.s32 1, %v603
  %v605 = vrot.slane %v597, %v604
  %v606 = vlaneseq
  %v607 = vshrl.u32 %v606, 7
  %v608 = vsub.s32 1, %v607
  %v609 = vrot.slane %v601, %v608
  %vm610 = vcmp.eq.s32.totalorder %v24, %v605
  %vm611 = vcmp.eq.s32.totalorder %v24, %v609
  %vm612 = vcmp.eq.s32.totalorder %v25, %v605
  %vm613 = vcmp.eq.s32.totalorder %v25, %v609
  %vm614 = vcmp.eq.s32.totalorder %v26, %v605
  %vm615 = vcmp.eq.s32.totalorder %v26, %v609
  %vm616 = vcmp.eq.s32.totalorder %v27, %v605
  %vm617 = vcmp.eq.s32.totalorder %v27, %v609
  %vm618 = vcmp.eq.s32.totalorder %v28, %v605
  %vm619 = vcmp.eq.s32.totalorder %v28, %v609
  %vm620 = vcmp.eq.s32.totalorder %v29, %v605
  %vm621 = vcmp.eq.s32.totalorder %v29, %v609
  %vm622 = vcmp.eq.s32.totalorder %v30, %v605
  %vm623 = vcmp.eq.s32.totalorder %v30, %v609
  %vm624 = vcmp.eq.s32.totalorder %v31, %v605
  %vm625 = vcmp.eq.s32.totalorder %v31, %v609
  %vm626 = vcmp.eq.s32.totalorder %v32, %v605
  %vm627 = vcmp.eq.s32.totalorder %v32, %v609
  %vm628 = vcmp.eq.s32.totalorder %v33, %v605
  %vm629 = vcmp.eq.s32.totalorder %v33, %v609
  %vm630 = vcmp.eq.s32.totalorder %v34, %v605
  %vm631 = vcmp.eq.s32.totalorder %v34, %v609
  %vm632 = vcmp.eq.s32.totalorder %v35, %v605
  %vm633 = vcmp.eq.s32.totalorder %v35, %v609
  %vm634 = vcmp.eq.s32.totalorder %v36, %v605
  %vm635 = vcmp.eq.s32.totalorder %v36, %v609
  %vm636 = vcmp.eq.s32.totalorder %v37, %v605
  %vm637 = vcmp.eq.s32.totalorder %v37, %v609
  %vm638 = vcmp.eq.s32.totalorder %v38, %v605
  %vm639 = vcmp.eq.s32.totalorder %v38, %v609
  %vm640 = vcmp.eq.s32.totalorder %v39, %v605
  %vm641 = vcmp.eq.s32.totalorder %v39, %v609
  %vm642 = vcmp.eq.s32.totalorder %v40, %v605
  %vm643 = vcmp.eq.s32.totalorder %v40, %v609
  %vm644 = vcmp.eq.s32.totalorder %v41, %v605
  %vm645 = vcmp.eq.s32.totalorder %v41, %v609
  %vm646 = vcmp.eq.s32.totalorder %v42, %v605
  %vm647 = vcmp.eq.s32.totalorder %v42, %v609
  %vm648 = vcmp.eq.s32.totalorder %v43, %v605
  %vm649 = vcmp.eq.s32.totalorder %v43, %v609
  %vm650 = vcmp.eq.s32.totalorder %v44, %v605
  %vm651 = vcmp.eq.s32.totalorder %v44, %v609
  %vm652 = vcmp.eq.s32.totalorder %v45, %v605
  %vm653 = vcmp.eq.s32.totalorder %v45, %v609
  %vm654 = vcmp.eq.s32.totalorder %v46, %v605
  %vm655 = vcmp.eq.s32.totalorder %v46, %v609
  %vm656 = vcmp.eq.s32.totalorder %v47, %v605
  %vm657 = vcmp.eq.s32.totalorder %v47, %v609
  %vm658 = vcmp.eq.s32.totalorder %v48, %v605
  %vm659 = vcmp.eq.s32.totalorder %v48, %v609
  %vm660 = vcmp.eq.s32.totalorder %v49, %v605
  %vm661 = vcmp.eq.s32.totalorder %v49, %v609
  %v662 = vsel %vm610, %v466, 0.0
  %v663 = vsel %vm611, %v468, 0.0
  %v664 = vsel %vm612, %v470, 0.0
  %v665 = vsel %vm613, %v472, 0.0
  %v666 = vsel %vm614, %v476, 0.0
  %v667 = vsel %vm615, %v478, 0.0
  %v668 = vsel %vm616, %v480, 0.0
  %v669 = vsel %vm617, %v482, 0.0
  %v670 = vsel %vm618, %v486, 0.0
  %v671 = vsel %vm619, %v488, 0.0
  %v672 = vsel %vm620, %v490, 0.0
  %v673 = vsel %vm621, %v492, 0.0
  %v674 = vsel %vm622, %v496, 0.0
  %v675 = vsel %vm623, %v498, 0.0
  %v676 = vsel %vm624, %v500, 0.0
  %v677 = vsel %vm625, %v502, 0.0
  %v678 = vsel %vm626, %v506, 0.0
  %v679 = vsel %vm627, %v508, 0.0
  %v680 = vsel %vm628, %v510, 0.0
  %v681 = vsel %vm629, %v512, 0.0
  %v682 = vsel %vm630, %v516, 0.0
  %v683 = vsel %vm631, %v518, 0.0
  %v684 = vsel %vm632, %v520, 0.0
  %v685 = vsel %vm633, %v522, 0.0
  %v686 = vsel %vm634, %v526, 0.0
  %v687 = vsel %vm635, %v528, 0.0
  %v688 = vsel %vm636, %v530, 0.0
  %v689 = vsel %vm637, %v532, 0.0
  %v690 = vsel %vm638, %v536, 0.0
  %v691 = vsel %vm639, %v538, 0.0
  %v692 = vsel %vm640, %v540, 0.0
  %v693 = vsel %vm641, %v542, 0.0
  %v694 = vsel %vm642, %v546, 0.0
  %v695 = vsel %vm643, %v548, 0.0
  %v696 = vsel %vm644, %v550, 0.0
  %v697 = vsel %vm645, %v552, 0.0
  %v698 = vsel %vm646, %v556, 0.0
  %v699 = vsel %vm647, %v558, 0.0
  %v700 = vsel %vm648, %v560, 0.0
  %v701 = vsel %vm649, %v562, 0.0
  %v702 = vsel %vm650, %v566, 0.0
  %v703 = vsel %vm651, %v568, 0.0
  %v704 = vsel %vm652, %v570, 0.0
  %v705 = vsel %vm653, %v572, 0.0
  %v706 = vsel %vm654, %v576, 0.0
  %v707 = vsel %vm655, %v578, 0.0
  %v708 = vsel %vm656, %v580, 0.0
  %v709 = vsel %vm657, %v582, 0.0
  %v710 = vsel %vm658, %v586, 0.0
  %v711 = vsel %vm659, %v588, 0.0
  %v712 = vsel %vm660, %v590, 0.0
  %v713 = vsel %vm661, %v592, 0.0
  %v714 = vpack.c.bf16 %v664, %v662
  %v715 = vpack.c.bf16 %v665, %v663
  %v716 = vpack.c.bf16 %v668, %v666
  %v717 = vpack.c.bf16 %v669, %v667
  %v718 = vpack.c.bf16 %v672, %v670
  %v719 = vpack.c.bf16 %v673, %v671
  %v720 = vpack.c.bf16 %v676, %v674
  %v721 = vpack.c.bf16 %v677, %v675
  %v722 = vpack.c.bf16 %v680, %v678
  %v723 = vpack.c.bf16 %v681, %v679
  %v724 = vpack.c.bf16 %v684, %v682
  %v725 = vpack.c.bf16 %v685, %v683
  %v726 = vpack.c.bf16 %v688, %v686
  %v727 = vpack.c.bf16 %v689, %v687
  %v728 = vpack.c.bf16 %v692, %v690
  %v729 = vpack.c.bf16 %v693, %v691
  %v730 = vpack.c.bf16 %v696, %v694
  %v731 = vpack.c.bf16 %v697, %v695
  %v732 = vpack.c.bf16 %v700, %v698
  %v733 = vpack.c.bf16 %v701, %v699
  %v734 = vpack.c.bf16 %v704, %v702
  %v735 = vpack.c.bf16 %v705, %v703
  %v736 = vpack.c.bf16 %v708, %v706
  %v737 = vpack.c.bf16 %v709, %v707
  %v738 = vpack.c.bf16 %v712, %v710
  %v739 = vpack.c.bf16 %v713, %v711
  %v741 = vsel %vm391, 1065369472, 0
  %743 = vmatprep.subr.bf16.mxu0 %v715
  %744 = vmatpush1.bf16.msra.mxu0 %v714
  %745 = vmatprep.subr.bf16.mxu0 %v717
  %746 = vmatpush1.bf16.msra.mxu0 %v716
  %747 = vmatprep.subr.bf16.mxu0 %v719
  %748 = vmatpush1.bf16.msra.mxu0 %v718
  %749 = vmatprep.subr.bf16.mxu0 %v721
  %750 = vmatpush1.bf16.msra.mxu0 %v720
  %751 = vmatprep.subr.bf16.mxu0 %v723
  %752 = vmatpush1.bf16.msra.mxu0 %v722
  %753 = vmatprep.subr.bf16.mxu0 %v725
  %754 = vmatpush1.bf16.msra.mxu0 %v724
  %755 = vmatprep.subr.bf16.mxu0 %v727
  %756 = vmatpush1.bf16.msra.mxu0 %v726
  %757 = vmatprep.subr.bf16.mxu0 %v729
  %758 = vmatpush1.bf16.msra.mxu0 %v728
  %759 = vmatprep.subr.bf16.mxu0 %v731
  %760 = vmatpush1.bf16.msra.mxu0 %v730
  %761 = vmatprep.subr.bf16.mxu0 %v733
  %762 = vmatpush1.bf16.msra.mxu0 %v732
  %763 = vmatprep.subr.bf16.mxu0 %v735
  %764 = vmatpush1.bf16.msra.mxu0 %v734
  %765 = vmatprep.subr.bf16.mxu0 %v737
  %766 = vmatpush1.bf16.msra.mxu0 %v736
  %767 = vmatprep.subr.bf16.mxu0 %v739
  %768 = vmatpush1.bf16.msra.mxu0 %v738
  %769 = vmatprep.subr.bf16.mxu0 0
  %770 = vmatpush1.bf16.msra.mxu0 0
  %771 = vmatprep.subr.bf16.mxu0 0
  %772 = vmatpush1.bf16.msra.mxu0 0
  %773 = vmatprep.subr.bf16.mxu0 0
  %774 = vmatpush1.bf16.msra.mxu0 0
  %775 = vmatprep.mubr.bf16.mxu0 %v741
  %776 = vmatmul.mubr.bf16.gmra.mrb[0].mxu0 1065369472
  %v777 = vpop.f32.mrb[0].mxu0
  %v778 = vadd.f32 0.0, %v777
  %v779 = vpop.f32.mrb[0].mxu0
  %v780 = vadd.f32 0.0, %v779
  %v781 = vpop.f32.mrb[0].mxu0
  %v782 = vpop.f32.mrb[0].mxu0
  %783 = vdwg.mxu0
  %v784 = vsub.f32 1.0, %v778
  %v785 = vsub.f32 1.0, %v780
  %v786 = vmul.f32 %v784, 0.1
  %v787 = vmul.f32 %v785, 0.1
  %v788 = vadd.f32 %v786, 1.0
  %v789 = vadd.f32 %v787, 1.0
  %v790 = vlaneseq
  %v791 = vshrl.u32 %v790, 7
  %v792 = vsub.s32 0, %v791
  %v793 = vrot.slane %v788, %v792
  %v794 = vlaneseq
  %v795 = vshrl.u32 %v794, 7
  %v796 = vsub.s32 0, %v795
  %v797 = vrot.slane %v789, %v796
  %v800 = vcombine.low %v793, %v797
  %v802 = vunpack.c.l.s4 1983009808
  %v803 = vunpack.c.0.s8 %v802
  %v804 = vlaneseq
  %v805 = vshrl.u32 %v804, 7
  %v806 = vsub.s32 %v803, %v805
  %v807 = vrot.slane %v800, %v806
  %v809 = vmul.f32 %v19, %v807
  %v812 = vunpack.c.l.s4 1983009808
  %v813 = vunpack.c.0.s8 %v812
  %v814 = vlaneseq
  %v815 = vshrl.u32 %v814, 7
  %v816 = vsub.s32 %v813, %v815
  %v817 = vrot.slane %v809, %v816
  %v818 = vcombine.high %v817, %v817
  %vm821 = vcmask 1041408
  %v822 = vsel %vm821, %v817, 0.0
  %v823 = vsel %vm821, %v818, 0.0
  %v824 = vadd.f32 %v822, %v823
  %825 = vadd.xlane.f32.xlu0 %v824
  %v826 = vpop.xlane.xlu0 %825
  %v827 = vrot.slane %v826, 4
  %v828 = vadd.f32 %v826, %v827
  %v829 = vrot.slane %v828, 2
  %v830 = vadd.f32 %v828, %v829
  %v831 = vrot.slane %v830, 1
  %v832 = vadd.f32 %v830, %v831
  %s833 = vtos %v832
  %v834 = vstv %s833
  %835 = vst [vmem:[%s3] sm:$0xff] %v834
  // Predicated region
  $region14: #{weighted_mse_loss.1} parent=0 // pred_check
    _
  $region15: #{weighted_mse_loss.1} parent=0 // pred_check_branch
    %837 = sbr.rel (0) target = $region17
  $region16: #{weighted_mse_loss.1} parent=0 // pred_region
    _
  $region17: #{weighted_mse_loss.1} parent=0 // pred_fallthru
    _
  // Predicated region
  $region18: #{weighted_mse_loss.1} parent=0 // pred_check
    _
  $region19: #{weighted_mse_loss.1} parent=0 // pred_check_branch
    %839 = sbr.rel (0) target = $region21
  $region20: #{weighted_mse_loss.1} parent=0 // pred_region
    _
  $region21: #{weighted_mse_loss.1} parent=0 // pred_fallthru
    _

</llo_original>
